<compile_context>
chip_gen: v5e
topology: v5e:2x2
jax: 0.10.0
libtpu: 0.0.40
codegen_flags: <defaults>
</compile_context>

<pallas_src>
import functools

import jax
import jax.numpy as jnp
from jax.experimental import pallas as pl
from jax.experimental.pallas import tpu as pltpu


LANES = 512           # lane-dense last dim (multiple of 128)
MAX_TILE_ROWS = 512   # 512 x 512 f32 = 1 MiB per input block (fits all chips' VMEM easily)


def _focal_loss_kernel(logits_ref, targets_ref, partial_ref,
                       *, alpha, gamma, n_total, tile_rows):
    i = pl.program_id(0)

    x = logits_ref[...].astype(jnp.float32)
    t = targets_ref[...].astype(jnp.float32)

    # Stable BCE-from-logits: softplus(x) = log1p(exp(-|x|)) + max(x, 0)
    #   log p      = x - softplus(x)
    #   log (1-p)  =   - softplus(x)
    # Clamp at -100 to mirror torch.nn.functional.binary_cross_entropy.
    sp = jnp.log1p(jnp.exp(-jnp.abs(x))) + jnp.maximum(x, 0.0)
    log_p_raw = x - sp
    p = jnp.exp(log_p_raw)                      # sigmoid(x), one EUP op
    log_p = jnp.maximum(log_p_raw, -100.0)
    log_1mp = jnp.maximum(-sp, -100.0)

    bce = -(t * log_p + (1.0 - t) * log_1mp)
    pt = p * t + (1.0 - p) * (1.0 - t)
    focal_weight = alpha * t + (1.0 - alpha) * (1.0 - t)

    one_minus_pt = 1.0 - pt
    if float(gamma) == 2.0:                     # default: square on the VALU
        mod = one_minus_pt * one_minus_pt
    elif float(gamma) == float(int(gamma)) and int(gamma) >= 0:
        mod = jnp.ones_like(one_minus_pt)
        for _ in range(int(gamma)):
            mod = mod * one_minus_pt
    else:                                       # non-integer gamma: fall back to power
        mod = jnp.power(one_minus_pt, jnp.float32(gamma))

    focal = focal_weight * mod * bce

    # Mask out the zero-padded tail (flat index >= n_total).
    row = jax.lax.broadcasted_iota(jnp.int32, (tile_rows, LANES), 0)
    lane = jax.lax.broadcasted_iota(jnp.int32, (tile_rows, LANES), 1)
    flat_idx = (i * tile_rows + row) * LANES + lane
    focal = jnp.where(flat_idx < n_total, focal, 0.0)

    # Per-tile partial sum, folded along sublane-groups with pure VALU adds
    # (no XLU cross-lane reduce per step); final reduction happens in JAX.
    partial = jnp.sum(focal.reshape(tile_rows // 8, 8, LANES), axis=0)  # (8, LANES)
    partial_ref[0] = partial


def custom_focal_loss(logits, targets, *, alpha=1.0, gamma=2.0):
    """Mean-reduced focal loss (CustomLoss defaults) via a Pallas TPU kernel.

    Accepts f32 or bf16 inputs (upcast to f32 inside the kernel)."""
    assert logits.shape == targets.shape
    n_total = int(logits.size)

    # Lane-dense repack: flatten to (padded_rows, LANES) with a zero-padded tail.
    rows_needed = pl.cdiv(n_total, LANES)
    tile_rows = min(MAX_TILE_ROWS, max(8, ((rows_needed + 7) // 8) * 8))
    padded_rows = pl.cdiv(rows_needed, tile_rows) * tile_rows
    num_tiles = padded_rows // tile_rows
    pad = padded_rows * LANES - n_total

    def repack(a):
        flat = a.reshape(-1)
        flat = jnp.pad(flat, (0, pad))
        return flat.reshape(padded_rows, LANES)

    logits2d = repack(logits)
    targets2d = repack(targets)

    kernel = functools.partial(
        _focal_loss_kernel,
        alpha=float(alpha),
        gamma=float(gamma),
        n_total=n_total,
        tile_rows=int(tile_rows),
    )

    partials = pl.pallas_call(
        kernel,
        out_shape=jax.ShapeDtypeStruct((num_tiles, 8, LANES), jnp.float32),
        grid_spec=pltpu.PrefetchScalarGridSpec(
            num_scalar_prefetch=0,
            grid=(num_tiles,),
            in_specs=[
                pl.BlockSpec((tile_rows, LANES), lambda i: (i, 0)),
                pl.BlockSpec((tile_rows, LANES), lambda i: (i, 0)),
            ],
            out_specs=pl.BlockSpec((1, 8, LANES), lambda i: (i, 0, 0)),
        ),
        compiler_params=pltpu.CompilerParams(
            # Independent per-tile partial sums -> safe to shard across TCs (v7x).
            dimension_semantics=("parallel",),
        ),
    )(logits2d, targets2d)

    # reduction == 'mean' : tiny final reduction in plain JAX.
    return jnp.sum(partials) / jnp.float32(n_total)


def _reference_focal_loss(logits, targets, alpha=1.0, gamma=2.0):
    # Mirrors the torch module (sigmoid -> BCE with log clamped at -100).
    p = jax.nn.sigmoid(logits)
    log_p = jnp.maximum(jnp.log(p), -100.0)
    log_1mp = jnp.maximum(jnp.log(1.0 - p), -100.0)
    bce = -(targets * log_p + (1.0 - targets) * log_1mp)
    pt = p * targets + (1.0 - p) * (1.0 - targets)
    fw = alpha * targets + (1.0 - alpha) * (1.0 - targets)
    return jnp.mean(fw * (1.0 - pt) ** gamma * bce)


if __name__ == "__main__":
    key = jax.random.PRNGKey(0)
    k_logits, k_targets = jax.random.split(key)

    B, C = 16, 10  # num_classes=10 per the module default
    logits = jax.random.normal(k_logits, (B, C), dtype=jnp.float32) * 2.0
    targets = (jax.random.uniform(k_targets, (B, C)) > 0.5).astype(jnp.float32)

    loss = custom_focal_loss(logits, targets)
    loss = jax.block_until_ready(loss)

    ref = _reference_focal_loss(logits, targets)
    assert jnp.allclose(loss, ref, rtol=1e-4, atol=1e-6), (loss, ref)

    print("KERNEL_OK")
</pallas_src>

<mosaic_0001>
module attributes {stable_mosaic.version = 11 : i64} {
  func.func @_focal_loss_kernel(%arg0: i32, %arg1: memref<8x512xf32, #tpu.memory_space<vmem>>, %arg2: memref<8x512xf32, #tpu.memory_space<vmem>>, %arg3: memref<1x8x512xf32, #tpu.memory_space<vmem>>) attributes {dimension_semantics = [#tpu.dimension_semantics<parallel>], iteration_bounds = array<i64: 1>, scalar_prefetch = 0 : i64, scratch_operands = 0 : i64, tpu.core_type = #tpu.core_type<tc>, window_params = [{transform_indices = @transform_0, window_bounds = array<i64: 8, 512>}, {transform_indices = @transform_1, window_bounds = array<i64: 8, 512>}, {transform_indices = @transform_2, window_bounds = array<i64: 1, 8, 512>}]} {
    %c0 = arith.constant 0 : index
    %c0_0 = arith.constant 0 : index
    %0 = vector.load %arg1[%c0, %c0_0] : memref<8x512xf32, #tpu.memory_space<vmem>>, vector<8x512xf32>
    %c0_1 = arith.constant 0 : index
    %c0_2 = arith.constant 0 : index
    %1 = vector.load %arg2[%c0_1, %c0_2] : memref<8x512xf32, #tpu.memory_space<vmem>>, vector<8x512xf32>
    %2 = math.absf %0 : vector<8x512xf32>
    %cst = arith.constant 0.000000e+00 : f32
    %3 = vector.broadcast %cst : f32 to vector<8x512xf32>
    %4 = arith.subf %3, %2 : vector<8x512xf32>
    %5 = math.exp %4 : vector<8x512xf32>
    %6 = math.log1p %5 : vector<8x512xf32>
    %cst_3 = arith.constant 0.000000e+00 : f32
    %7 = vector.broadcast %cst_3 : f32 to vector<8x512xf32>
    %8 = arith.maximumf %0, %7 : vector<8x512xf32>
    %9 = arith.addf %6, %8 : vector<8x512xf32>
    %10 = arith.subf %0, %9 : vector<8x512xf32>
    %11 = math.exp %10 : vector<8x512xf32>
    %cst_4 = arith.constant -1.000000e+02 : f32
    %12 = vector.broadcast %cst_4 : f32 to vector<8x512xf32>
    %13 = arith.maximumf %10, %12 : vector<8x512xf32>
    %cst_5 = arith.constant 0.000000e+00 : f32
    %14 = vector.broadcast %cst_5 : f32 to vector<8x512xf32>
    %15 = arith.subf %14, %9 : vector<8x512xf32>
    %cst_6 = arith.constant -1.000000e+02 : f32
    %16 = vector.broadcast %cst_6 : f32 to vector<8x512xf32>
    %17 = arith.maximumf %15, %16 : vector<8x512xf32>
    %18 = arith.mulf %1, %13 : vector<8x512xf32>
    %cst_7 = arith.constant 1.000000e+00 : f32
    %19 = vector.broadcast %cst_7 : f32 to vector<8x512xf32>
    %20 = arith.subf %19, %1 : vector<8x512xf32>
    %21 = arith.mulf %20, %17 : vector<8x512xf32>
    %22 = arith.addf %18, %21 : vector<8x512xf32>
    %cst_8 = arith.constant 0.000000e+00 : f32
    %23 = vector.broadcast %cst_8 : f32 to vector<8x512xf32>
    %24 = arith.subf %23, %22 : vector<8x512xf32>
    %25 = arith.mulf %11, %1 : vector<8x512xf32>
    %cst_9 = arith.constant 1.000000e+00 : f32
    %26 = vector.broadcast %cst_9 : f32 to vector<8x512xf32>
    %27 = arith.subf %26, %11 : vector<8x512xf32>
    %cst_10 = arith.constant 1.000000e+00 : f32
    %28 = vector.broadcast %cst_10 : f32 to vector<8x512xf32>
    %29 = arith.subf %28, %1 : vector<8x512xf32>
    %30 = arith.mulf %27, %29 : vector<8x512xf32>
    %31 = arith.addf %25, %30 : vector<8x512xf32>
    %cst_11 = arith.constant 1.000000e+00 : f32
    %32 = vector.broadcast %cst_11 : f32 to vector<8x512xf32>
    %33 = arith.mulf %32, %1 : vector<8x512xf32>
    %cst_12 = arith.constant 1.000000e+00 : f32
    %34 = vector.broadcast %cst_12 : f32 to vector<8x512xf32>
    %35 = arith.subf %34, %1 : vector<8x512xf32>
    %cst_13 = arith.constant 0.000000e+00 : f32
    %36 = vector.broadcast %cst_13 : f32 to vector<8x512xf32>
    %37 = arith.mulf %36, %35 : vector<8x512xf32>
    %38 = arith.addf %33, %37 : vector<8x512xf32>
    %cst_14 = arith.constant 1.000000e+00 : f32
    %39 = vector.broadcast %cst_14 : f32 to vector<8x512xf32>
    %40 = arith.subf %39, %31 : vector<8x512xf32>
    %41 = arith.mulf %40, %40 : vector<8x512xf32>
    %42 = arith.mulf %38, %41 : vector<8x512xf32>
    %43 = arith.mulf %42, %24 : vector<8x512xf32>
    %44 = tpu.iota {dimensions = array<i32: 0>} : vector<8x512xi32>
    %45 = tpu.iota {dimensions = array<i32: 1>} : vector<8x512xi32>
    %c8_i32 = arith.constant 8 : i32
    %46 = arith.muli %arg0, %c8_i32 : i32
    %47 = vector.broadcast %46 : i32 to vector<8x512xi32>
    %48 = arith.addi %47, %44 : vector<8x512xi32>
    %c512_i32 = arith.constant 512 : i32
    %49 = vector.broadcast %c512_i32 : i32 to vector<8x512xi32>
    %50 = arith.muli %48, %49 : vector<8x512xi32>
    %51 = arith.addi %50, %45 : vector<8x512xi32>
    %c160_i32 = arith.constant 160 : i32
    %52 = vector.broadcast %c160_i32 : i32 to vector<8x512xi32>
    %53 = arith.cmpi slt, %51, %52 : vector<8x512xi32>
    %cst_15 = arith.constant 0.000000e+00 : f32
    %54 = vector.broadcast %cst_15 : f32 to vector<8x512xf32>
    %55 = arith.select %53, %43, %54 : vector<8x512xi1>, vector<8x512xf32>
    %56 = vector.shape_cast %55 : vector<8x512xf32> to vector<1x8x512xf32>
    %cst_16 = arith.constant dense<0.000000e+00> : vector<8x512xf32>
    %57 = vector.multi_reduction <add>, %56, %cst_16 [0] : vector<1x8x512xf32> to vector<8x512xf32>
    %c0_17 = arith.constant 0 : index
    %c0_18 = arith.constant 0 : index
    %c0_19 = arith.constant 0 : index
    %58 = vector.load %arg3[%c0_17, %c0_18, %c0_19] : memref<1x8x512xf32, #tpu.memory_space<vmem>>, vector<1x8x512xf32>
    %59 = vector.shape_cast %58 : vector<1x8x512xf32> to vector<8x512xf32>
    %60 = vector.shape_cast %57 : vector<8x512xf32> to vector<1x8x512xf32>
    tpu.vector_store %arg3[%c0_17, %c0_18, %c0_19], %60 {strides = array<i32>} : memref<1x8x512xf32, #tpu.memory_space<vmem>>, vector<1x8x512xf32>,
    return
  }
  func.func @transform_0(%arg0: i32) -> (i32, i32) {
    %c0_i32 = arith.constant 0 : i32
    %c0_i32_0 = arith.constant 0 : i32
    return %arg0, %c0_i32 : i32, i32
  }
  func.func @transform_1(%arg0: i32) -> (i32, i32) {
    %c0_i32 = arith.constant 0 : i32
    %c0_i32_0 = arith.constant 0 : i32
    return %arg0, %c0_i32 : i32, i32
  }
  func.func @transform_2(%arg0: i32) -> (i32, i32, i32) {
    %c0_i32 = arith.constant 0 : i32
    %c0_i32_0 = arith.constant 0 : i32
    %c0_i32_1 = arith.constant 0 : i32
    return %arg0, %c0_i32, %c0_i32_0 : i32, i32, i32
  }
}

</mosaic_0001>

<llo_original>
// kernel: tpu_custom_call.1
$region0: #{tpu_custom_call.1}
  #allocation0 [shape = 'u32[]', space=smem, size = 0x4, offset = 0x4, fixed_abs, tag = 'smem constant byte address 0x4 - core index']
  #allocation1 [shape = 'u32[72,128]{1,0:T(1,128)}', space=vmem, size = 0x9000, scoped, tag = 'internal scratch']
  %s0 = inlined_call_operand.hbm [shape: f32[8,512], index: 0, kind: input, shape index: {}]
  %s1 = inlined_call_operand.hbm [shape: f32[8,512], index: 1, kind: input, shape index: {}]
  %s2 = inlined_call_operand.hbm [shape: f32[1,8,512], index: 2, kind: output, shape index: {}]
  %s3 = sld [smem:[#allocation0]]
  $region26: #{tpu_custom_call.1} parent=0
    _
  %s5 = ssub.s32 1, %s3
  %s6 = scalar_select 0, %s5, %s3
  $region1: #{tpu_custom_call.1} parent=0
    #allocation2 [shape = 'u8[16384]{0}', space=vmem, size = 0x4000, scoped, tag = 'input window, operand 0, single buffered']
    #allocation3 [shape = 's32[1]{0}', space=sflag, size = 0x4, scoped, tag = 'scoped memory for tpu_custom_call.1']
    #allocation4 [shape = 's32[1]{0}', space=sflag, size = 0x4, scoped, tag = 'scoped memory for tpu_custom_call.1']
    #allocation5 [shape = 'u8[16384]{0}', space=vmem, size = 0x4000, scoped, tag = 'input window, operand 1, single buffered']
    #allocation6 [shape = 's32[1]{0}', space=sflag, size = 0x4, scoped, tag = 'scoped memory for tpu_custom_call.1']
    #allocation7 [shape = 'u8[16384]{0}', space=vmem, size = 0x4000, scoped, tag = 'output window, operand 0, single buffered']
    %7 = vsyncpa [#allocation3], 0
    %8 = vsyncpa [#allocation6], 0
    %9 = vsyncpa [#allocation4], 0
    // Predicated region
    $region2: #{tpu_custom_call.1} parent=1 // pred_check
      _
    $region3: #{tpu_custom_call.1} parent=1 // pred_check_branch
      %11 = sbr.rel (0) target = $region5
    $region4: #{tpu_custom_call.1} parent=1 // pred_region
      %13 = vsyncadd [#allocation3], 0
      %s15 = sshll.u32 %s0, 4
      %s16 = int_to_ptr.hbm [resolvable:$true] %s15
      %s17 = sshll.u32 [#allocation2], 4
      %s18 = int_to_ptr.vmem [resolvable:$true] %s17
      %20 = dma.hbm_to_vmem [thread:$0]  %s16, 512, %s18, [#allocation3]
    $region5: #{tpu_custom_call.1} parent=1 // pred_fallthru
      _
    // Predicated region
    $region6: #{tpu_custom_call.1} parent=1 // pred_check
      _
    $region7: #{tpu_custom_call.1} parent=1 // pred_check_branch
      %22 = sbr.rel (0) target = $region9
    $region8: #{tpu_custom_call.1} parent=1 // pred_region
      %24 = vsyncadd [#allocation6], 0
      %s26 = sshll.u32 %s1, 4
      %s27 = int_to_ptr.hbm [resolvable:$true] %s26
      %s28 = sshll.u32 [#allocation5], 4
      %s29 = int_to_ptr.vmem [resolvable:$true] %s28
      %31 = dma.hbm_to_vmem [thread:$0]  %s27, 512, %s29, [#allocation6]
    $region9: #{tpu_custom_call.1} parent=1 // pred_fallthru
      _
    // Predicated region
    $region10: #{tpu_custom_call.1} parent=1 // pred_check
      _
    $region11: #{tpu_custom_call.1} parent=1 // pred_check_branch
      %33 = sbr.rel (0) target = $region13
    $region12: #{tpu_custom_call.1} parent=1 // pred_region
      %35 = dma.done [#allocation3], 512
    $region13: #{tpu_custom_call.1} parent=1 // pred_fallthru
      _
    // Predicated region
    $region14: #{tpu_custom_call.1} parent=1 // pred_check
      _
    $region15: #{tpu_custom_call.1} parent=1 // pred_check_branch
      %37 = sbr.rel (0) target = $region17
    $region16: #{tpu_custom_call.1} parent=1 // pred_region
      %39 = dma.done [#allocation6], 512
    $region17: #{tpu_custom_call.1} parent=1 // pred_fallthru
      _
    %v40 = vld [vmem:[#allocation2] sm:$0xff]
    %v41 = vld [vmem:[#allocation2 + $0x8] sm:$0xff]
    %v42 = vld [vmem:[#allocation2 + $0x10] sm:$0xff]
    %v43 = vld [vmem:[#allocation2 + $0x18] sm:$0xff]
    %v44 = vld [vmem:[#allocation5] sm:$0xff]
    %v45 = vld [vmem:[#allocation5 + $0x8] sm:$0xff]
    %v46 = vld [vmem:[#allocation5 + $0x10] sm:$0xff]
    %v47 = vld [vmem:[#allocation5 + $0x18] sm:$0xff]
    %v48 = vand.u32 2147483647, %v40
    %v49 = vand.u32 2147483647, %v41
    %v50 = vand.u32 2147483647, %v42
    %v51 = vand.u32 2147483647, %v43
    %v52 = vsub.f32 0.0, %v48
    %v53 = vsub.f32 0.0, %v49
    %v54 = vsub.f32 0.0, %v50
    %v55 = vsub.f32 0.0, %v51
    %v56 = vmul.f32 %v52, 1.442695
    %v57 = vpow.pop %v56
    %v58 = vmul.f32 %v53, 1.442695
    %v59 = vpow.pop %v58
    %v60 = vmul.f32 %v54, 1.442695
    %v61 = vpow.pop %v60
    %v62 = vmul.f32 %v55, 1.442695
    %v63 = vpow.pop %v62
    %v64 = vadd.f32 %v57, 1.0
    %v65 = vlog2.pop %v64
    %v66 = vmul.f32 %v65, 0.6931472
    %v67 = vmul.f32 -0.5, %v57
    %v68 = vadd.f32 %v67, 1.0
    %v69 = vmul.f32 %v68, %v57
    %v70 = vand.u32 2147483647, %v57
    %vm71 = vcmp.lt.f32.partialorder %v70, 0.0004427343
    %v72 = vsel %vm71, %v69, %v66
    %v73 = vadd.f32 %v59, 1.0
    %v74 = vlog2.pop %v73
    %v75 = vmul.f32 %v74, 0.6931472
    %v76 = vmul.f32 -0.5, %v59
    %v77 = vadd.f32 %v76, 1.0
    %v78 = vmul.f32 %v77, %v59
    %v79 = vand.u32 2147483647, %v59
    %vm80 = vcmp.lt.f32.partialorder %v79, 0.0004427343
    %v81 = vsel %vm80, %v78, %v75
    %v82 = vadd.f32 %v61, 1.0
    %v83 = vlog2.pop %v82
    %v84 = vmul.f32 %v83, 0.6931472
    %v85 = vmul.f32 -0.5, %v61
    %v86 = vadd.f32 %v85, 1.0
    %v87 = vmul.f32 %v86, %v61
    %v88 = vand.u32 2147483647, %v61
    %vm89 = vcmp.lt.f32.partialorder %v88, 0.0004427343
    %v90 = vsel %vm89, %v87, %v84
    %v91 = vadd.f32 %v63, 1.0
    %v92 = vlog2.pop %v91
    %v93 = vmul.f32 %v92, 0.6931472
    %v94 = vmul.f32 -0.5, %v63
    %v95 = vadd.f32 %v94, 1.0
    %v96 = vmul.f32 %v95, %v63
    %v97 = vand.u32 2147483647, %v63
    %vm98 = vcmp.lt.f32.partialorder %v97, 0.0004427343
    %v99 = vsel %vm98, %v96, %v93
    %v100 = vmax.f32 %v40, 0.0
    %v101 = vmax.f32 %v41, 0.0
    %v102 = vmax.f32 %v42, 0.0
    %v103 = vmax.f32 %v43, 0.0
    %v104 = vadd.f32 %v72, %v100
    %v105 = vadd.f32 %v81, %v101
    %v106 = vadd.f32 %v90, %v102
    %v107 = vadd.f32 %v99, %v103
    %v108 = vsub.f32 %v40, %v104
    %v109 = vsub.f32 %v41, %v105
    %v110 = vsub.f32 %v42, %v106
    %v111 = vsub.f32 %v43, %v107
    %v112 = vmul.f32 %v108, 1.442695
    %v113 = vpow.pop %v112
    %v114 = vmul.f32 %v109, 1.442695
    %v115 = vpow.pop %v114
    %v116 = vmul.f32 %v110, 1.442695
    %v117 = vpow.pop %v116
    %v118 = vmul.f32 %v111, 1.442695
    %v119 = vpow.pop %v118
    %v120 = vmax.f32 %v108, -100.0
    %v121 = vmax.f32 %v109, -100.0
    %v122 = vmax.f32 %v110, -100.0
    %v123 = vmax.f32 %v111, -100.0
    %v124 = vsub.f32 0.0, %v104
    %v125 = vsub.f32 0.0, %v105
    %v126 = vsub.f32 0.0, %v106
    %v127 = vsub.f32 0.0, %v107
    %v128 = vmax.f32 %v124, -100.0
    %v129 = vmax.f32 %v125, -100.0
    %v130 = vmax.f32 %v126, -100.0
    %v131 = vmax.f32 %v127, -100.0
    %v132 = vmul.f32 %v44, %v120
    %v133 = vmul.f32 %v45, %v121
    %v134 = vmul.f32 %v46, %v122
    %v135 = vmul.f32 %v47, %v123
    %v136 = vsub.f32 1.0, %v44
    %v137 = vsub.f32 1.0, %v45
    %v138 = vsub.f32 1.0, %v46
    %v139 = vsub.f32 1.0, %v47
    %v140 = vmul.f32 %v136, %v128
    %v141 = vmul.f32 %v137, %v129
    %v142 = vmul.f32 %v138, %v130
    %v143 = vmul.f32 %v139, %v131
    %v144 = vadd.f32 %v132, %v140
    %v145 = vadd.f32 %v133, %v141
    %v146 = vadd.f32 %v134, %v142
    %v147 = vadd.f32 %v135, %v143
    %v148 = vsub.f32 0.0, %v144
    %v149 = vsub.f32 0.0, %v145
    %v150 = vsub.f32 0.0, %v146
    %v151 = vsub.f32 0.0, %v147
    %v152 = vmul.f32 %v113, %v44
    %v153 = vmul.f32 %v115, %v45
    %v154 = vmul.f32 %v117, %v46
    %v155 = vmul.f32 %v119, %v47
    %v156 = vsub.f32 1.0, %v113
    %v157 = vsub.f32 1.0, %v115
    %v158 = vsub.f32 1.0, %v117
    %v159 = vsub.f32 1.0, %v119
    %v160 = vmul.f32 %v156, %v136
    %v161 = vmul.f32 %v157, %v137
    %v162 = vmul.f32 %v158, %v138
    %v163 = vmul.f32 %v159, %v139
    %v164 = vadd.f32 %v152, %v160
    %v165 = vadd.f32 %v153, %v161
    %v166 = vadd.f32 %v154, %v162
    %v167 = vadd.f32 %v155, %v163
    %v168 = vmul.f32 %v136, 0.0
    %v169 = vmul.f32 %v137, 0.0
    %v170 = vmul.f32 %v138, 0.0
    %v171 = vmul.f32 %v139, 0.0
    %v172 = vadd.f32 %v44, %v168
    %v173 = vadd.f32 %v45, %v169
    %v174 = vadd.f32 %v46, %v170
    %v175 = vadd.f32 %v47, %v171
    %v176 = vsub.f32 1.0, %v164
    %v177 = vsub.f32 1.0, %v165
    %v178 = vsub.f32 1.0, %v166
    %v179 = vsub.f32 1.0, %v167
    %v180 = vmul.f32 %v176, %v176
    %v181 = vmul.f32 %v177, %v177
    %v182 = vmul.f32 %v178, %v178
    %v183 = vmul.f32 %v179, %v179
    %v184 = vmul.f32 %v172, %v180
    %v185 = vmul.f32 %v173, %v181
    %v186 = vmul.f32 %v174, %v182
    %v187 = vmul.f32 %v175, %v183
    %v188 = vmul.f32 %v184, %v148
    %v189 = vmul.f32 %v185, %v149
    %v190 = vmul.f32 %v186, %v150
    %v191 = vmul.f32 %v187, %v151
    %v192 = vlaneseq
    %v193 = vshrl.u32 %v192, 7
    %v194 = vlaneseq
    %v195 = vand.u32 %v194, 127
    %v196 = vadd.s32 %v195, 128
    %v197 = vadd.s32 %v195, 256
    %v198 = vadd.s32 %v195, 384
    %s199 = smul.u32 0, 8
    %v200 = vstv %s199
    %v201 = vadd.s32 %v200, %v193
    %v202 = vmul.u32 %v201, 512
    %v203 = vadd.s32 %v202, %v195
    %v204 = vadd.s32 %v202, %v196
    %v205 = vadd.s32 %v202, %v197
    %v206 = vadd.s32 %v202, %v198
    %vm207 = vcmp.lt.s32.totalorder %v203, 160
    %vm208 = vcmp.lt.s32.totalorder %v204, 160
    %vm209 = vcmp.lt.s32.totalorder %v205, 160
    %vm210 = vcmp.lt.s32.totalorder %v206, 160
    %v211 = vsel %vm207, %v188, 0.0
    %v212 = vsel %vm208, %v189, 0.0
    %v213 = vsel %vm209, %v190, 0.0
    %v214 = vsel %vm210, %v191, 0.0
    %v215 = vadd.f32 %v211, 0.0
    %v216 = vadd.f32 %v212, 0.0
    %v217 = vadd.f32 %v213, 0.0
    %v218 = vadd.f32 %v214, 0.0
    %219 = vst [vmem:[#allocation7] sm:$0xff] %v215
    %220 = vst [vmem:[#allocation7 + $0x8] sm:$0xff] %v216
    %221 = vst [vmem:[#allocation7 + $0x10] sm:$0xff] %v217
    %222 = vst [vmem:[#allocation7 + $0x18] sm:$0xff] %v218
    // Predicated region
    $region18: #{tpu_custom_call.1} parent=1 // pred_check
      _
    $region19: #{tpu_custom_call.1} parent=1 // pred_check_branch
      %224 = sbr.rel (0) target = $region21
    $region20: #{tpu_custom_call.1} parent=1 // pred_region
      %226 = vsyncadd [#allocation4], 0
      %s228 = sshll.u32 [#allocation7], 4
      %s229 = int_to_ptr.vmem [resolvable:$true] %s228
      %s230 = sshll.u32 %s2, 4
      %s231 = int_to_ptr.hbm [resolvable:$true] %s230
      %233 = dma.vmem_to_hbm [thread:$0]  %s229, 512, %s231, [#allocation4]
    $region21: #{tpu_custom_call.1} parent=1 // pred_fallthru
      _
    // Predicated region
    $region22: #{tpu_custom_call.1} parent=1 // pred_check
      _
    $region23: #{tpu_custom_call.1} parent=1 // pred_check_branch
      %235 = sbr.rel (0) target = $region25
    $region24: #{tpu_custom_call.1} parent=1 // pred_region
      %237 = dma.done [#allocation4], 512
    $region25: #{tpu_custom_call.1} parent=1 // pred_fallthru
      _
    %238 = vsyncpa [#allocation3], 1
    %239 = vsyncpa [#allocation6], 1
    %240 = vsyncpa [#allocation4], 1

</llo_original>
